<compile_context>
chip_gen: v5e
topology: v5e:2x2
jax: 0.10.0
libtpu: 0.0.40
codegen_flags: <defaults>
</compile_context>

<pallas_src>
import jax
import jax.numpy as jnp
from jax.experimental import pallas as pl
from jax.experimental.pallas import tpu as pltpu

# Synthetic stand-ins for the global config the original module reads.
FEATURE_AUGMENT = ["node_degree", "node_clustering_coefficient"]
FEATURE_AUGMENT_DIMS = [8, 16]
AUGMENT_METHOD = "concat"


def _make_concat_kernel(dims):
    """Build a kernel writing each input tile into its static output slab.

    Slab offsets (0/32/40 for the default config) are not lane-aligned, so
    these are masked stores within VMEM — cheap, and per the review they are
    not the bottleneck; the HBM writeback is one dense block DMA per tile.
    """
    offsets = []
    off = 0
    for d in dims:
        offsets.append(off)
        off += d

    def kernel(*refs):
        out_ref = refs[-1]
        for in_ref, o, d in zip(refs[:-1], offsets, dims):
            out_ref[:, o:o + d] = in_ref[...]

    return kernel


def pallas_concat_last_dim(feature_list, *, tile_n=2048):
    """Concatenate a list of [N, D_i] arrays along the last dim via Pallas.

    Row-tiled over the node axis; the Pallas pipeline double-buffers each
    input block DMA and the output writeback. Purely memory-bound.
    """
    n = feature_list[0].shape[0]
    dims = [int(f.shape[-1]) for f in feature_list]
    d_out = sum(dims)

    # Explicit dtype handling (review correctness concern): promote like
    # torch.cat / jnp.concatenate would, and cast in the wrapper so the kernel
    # never silently narrows an integer augmentation feature on store.
    out_dtype = jnp.result_type(*[f.dtype for f in feature_list])
    feature_list = [f.astype(out_dtype) for f in feature_list]

    # Tile the node axis. Whole-array block if it already fits one tile
    # (full array dims satisfy the (8,128) rule even for ragged N); otherwise
    # keep tile_n a multiple of 8 and let Pallas handle the ragged last block.
    if n <= tile_n:
        tile_n = n
    else:
        tile_n = max(8, (tile_n // 8) * 8)
    grid = (pl.cdiv(n, tile_n),)

    itemsize = jnp.dtype(out_dtype).itemsize
    cost = pl.CostEstimate(
        flops=0,
        transcendentals=0,
        bytes_accessed=2 * n * d_out * itemsize,  # read everything + write out
    )

    in_specs = [pl.BlockSpec((tile_n, d), lambda i: (i, 0)) for d in dims]
    out_spec = pl.BlockSpec((tile_n, d_out), lambda i: (i, 0))

    return pl.pallas_call(
        _make_concat_kernel(dims),
        out_shape=jax.ShapeDtypeStruct((n, d_out), out_dtype),
        grid=grid,
        in_specs=in_specs,
        out_specs=out_spec,
        cost_estimate=cost,
        compiler_params=pltpu.CompilerParams(
            # Rows are independent -> shard across both TensorCores on v7x.
            # TODO(synk): verify sharding on v7x; explicit core split
            # (leading grid axis of size num_cores) if not.
            dimension_semantics=("parallel",),
        ),
    )(*feature_list)


class Preprocess:
    """JAX/Pallas port of the PyTorch Preprocess module (concat augmentation)."""

    def __init__(self, dim_in):
        self.dim_in = dim_in
        # TODO(synk): the 'add' branch (per-key nn.Linear projections) is not
        # exercised here since AUGMENT_METHOD == 'concat' has no parameters.

    @property
    def dim_out(self):
        if AUGMENT_METHOD == "concat":
            return self.dim_in + sum(FEATURE_AUGMENT_DIMS)
        raise ValueError(f"Unknown feature augmentation method {AUGMENT_METHOD}.")

    def __call__(self, batch):
        if AUGMENT_METHOD != "concat":
            raise ValueError(f"Unknown feature augmentation method {AUGMENT_METHOD}.")
        feature_list = [batch["node_feature"]]
        for key in FEATURE_AUGMENT:
            feature_list.append(batch[key])
        batch = dict(batch)
        batch["node_feature"] = pallas_concat_last_dim(feature_list)
        return batch


if __name__ == "__main__":
    key = jax.random.PRNGKey(0)
    num_nodes = 16
    dim_in = 32

    k0, k1, k2 = jax.random.split(key, 3)
    batch = {
        "node_feature": jax.random.normal(k0, (num_nodes, dim_in), dtype=jnp.float32),
        "node_degree": jax.random.normal(
            k1, (num_nodes, FEATURE_AUGMENT_DIMS[0]), dtype=jnp.float32
        ),
        "node_clustering_coefficient": jax.random.normal(
            k2, (num_nodes, FEATURE_AUGMENT_DIMS[1]), dtype=jnp.float32
        ),
    }

    model = Preprocess(dim_in)
    out_batch = model(batch)
    result = jax.block_until_ready(out_batch["node_feature"])

    # Correctness check vs. plain JAX concat (same semantics as torch.cat(dim=-1)).
    ref = jnp.concatenate(
        [batch["node_feature"], batch["node_degree"], batch["node_clustering_coefficient"]],
        axis=-1,
    )
    assert result.shape == (num_nodes, model.dim_out)
    assert jnp.allclose(result, ref)

    # Also exercise the tiled (multi-grid-point, ragged-last-block) path.
    big_n = 2048 * 2 + 40  # > tile_n and not a multiple of the tile
    kb0, kb1, kb2 = jax.random.split(jax.random.PRNGKey(1), 3)
    big_batch = {
        "node_feature": jax.random.normal(kb0, (big_n, dim_in), dtype=jnp.float32),
        "node_degree": jax.random.normal(
            kb1, (big_n, FEATURE_AUGMENT_DIMS[0]), dtype=jnp.float32
        ),
        "node_clustering_coefficient": jax.random.normal(
            kb2, (big_n, FEATURE_AUGMENT_DIMS[1]), dtype=jnp.float32
        ),
    }
    big_out = model(big_batch)
    big_result = jax.block_until_ready(big_out["node_feature"])
    big_ref = jnp.concatenate(
        [
            big_batch["node_feature"],
            big_batch["node_degree"],
            big_batch["node_clustering_coefficient"],
        ],
        axis=-1,
    )
    assert big_result.shape == (big_n, model.dim_out)
    assert jnp.allclose(big_result, big_ref)

    print("KERNEL_OK")
</pallas_src>

<mosaic_0001>
module attributes {stable_mosaic.version = 11 : i64} {
  func.func @kernel(%arg0: i32, %arg1: memref<16x32xf32, #tpu.memory_space<vmem>>, %arg2: memref<16x8xf32, #tpu.memory_space<vmem>>, %arg3: memref<16x16xf32, #tpu.memory_space<vmem>>, %arg4: memref<16x56xf32, #tpu.memory_space<vmem>>) attributes {dimension_semantics = [#tpu.dimension_semantics<parallel>], iteration_bounds = array<i64: 1>, scalar_prefetch = 0 : i64, scratch_operands = 0 : i64, tpu.core_type = #tpu.core_type<tc>, window_params = [{transform_indices = @transform_0, window_bounds = array<i64: 16, 32>}, {transform_indices = @transform_1, window_bounds = array<i64: 16, 8>}, {transform_indices = @transform_2, window_bounds = array<i64: 16, 16>}, {transform_indices = @transform_3, window_bounds = array<i64: 16, 56>}]} {
    %c0 = arith.constant 0 : index
    %c0_0 = arith.constant 0 : index
    %0 = vector.load %arg1[%c0, %c0_0] : memref<16x32xf32, #tpu.memory_space<vmem>>, vector<16x32xf32>
    %c0_1 = arith.constant 0 : index
    %c0_2 = arith.constant 0 : index
    %1 = vector.load %arg4[%c0_1, %c0_2] : memref<16x56xf32, #tpu.memory_space<vmem>>, vector<16x32xf32>
    tpu.vector_store %arg4[%c0_1, %c0_2], %0 {strides = array<i32>} : memref<16x56xf32, #tpu.memory_space<vmem>>, vector<16x32xf32>,
    %c0_3 = arith.constant 0 : index
    %c0_4 = arith.constant 0 : index
    %2 = vector.load %arg2[%c0_3, %c0_4] : memref<16x8xf32, #tpu.memory_space<vmem>>, vector<16x8xf32>
    %c0_5 = arith.constant 0 : index
    %c32 = arith.constant 32 : index
    %3 = vector.load %arg4[%c0_5, %c32] : memref<16x56xf32, #tpu.memory_space<vmem>>, vector<16x8xf32>
    tpu.vector_store %arg4[%c0_5, %c32], %2 {strides = array<i32>} : memref<16x56xf32, #tpu.memory_space<vmem>>, vector<16x8xf32>,
    %c0_6 = arith.constant 0 : index
    %c0_7 = arith.constant 0 : index
    %4 = vector.load %arg3[%c0_6, %c0_7] : memref<16x16xf32, #tpu.memory_space<vmem>>, vector<16x16xf32>
    %c0_8 = arith.constant 0 : index
    %c40 = arith.constant 40 : index
    %5 = vector.load %arg4[%c0_8, %c40] : memref<16x56xf32, #tpu.memory_space<vmem>>, vector<16x16xf32>
    tpu.vector_store %arg4[%c0_8, %c40], %4 {strides = array<i32>} : memref<16x56xf32, #tpu.memory_space<vmem>>, vector<16x16xf32>,
    return
  }
  func.func @transform_0(%arg0: i32) -> (i32, i32) {
    %c0_i32 = arith.constant 0 : i32
    %c0_i32_0 = arith.constant 0 : i32
    return %arg0, %c0_i32 : i32, i32
  }
  func.func @transform_1(%arg0: i32) -> (i32, i32) {
    %c0_i32 = arith.constant 0 : i32
    %c0_i32_0 = arith.constant 0 : i32
    return %arg0, %c0_i32 : i32, i32
  }
  func.func @transform_2(%arg0: i32) -> (i32, i32) {
    %c0_i32 = arith.constant 0 : i32
    %c0_i32_0 = arith.constant 0 : i32
    return %arg0, %c0_i32 : i32, i32
  }
  func.func @transform_3(%arg0: i32) -> (i32, i32) {
    %c0_i32 = arith.constant 0 : i32
    %c0_i32_0 = arith.constant 0 : i32
    return %arg0, %c0_i32 : i32, i32
  }
}

</mosaic_0001>

<llo_original>
// kernel: tpu_custom_call.1
$region0: #{tpu_custom_call.1}
  #allocation0 [shape = 'u32[]', space=smem, size = 0x4, offset = 0x4, fixed_abs, tag = 'smem constant byte address 0x4 - core index']
  #allocation1 [shape = 'u32[72,128]{1,0:T(1,128)}', space=vmem, size = 0x9000, scoped, tag = 'internal scratch']
  %s0 = inlined_call_operand.vmem [shape: f32[16,32], index: 0, kind: input, shape index: {}]
  %s1 = inlined_call_operand.vmem [shape: f32[16,8], index: 1, kind: input, shape index: {}]
  %s2 = inlined_call_operand.hbm [shape: f32[16,16], index: 2, kind: input, shape index: {}]
  %s3 = inlined_call_operand.hbm [shape: f32[16,56], index: 3, kind: output, shape index: {}]
  %s4 = sld [smem:[#allocation0]]
  $region26: #{tpu_custom_call.1} parent=0
    _
  %s6 = ssub.s32 1, %s4
  %s7 = scalar_select 0, %s6, %s4
  $region1: #{tpu_custom_call.1} parent=0
    #allocation2 [shape = 'u8[8192]{0}', space=vmem, size = 0x2000, scoped, tag = 'input window, operand 2, single buffered']
    #allocation3 [shape = 's32[1]{0}', space=sflag, size = 0x4, scoped, tag = 'scoped memory for tpu_custom_call.1']
    #allocation4 [shape = 's32[1]{0}', space=sflag, size = 0x4, scoped, tag = 'scoped memory for tpu_custom_call.1']
    #allocation5 [shape = 'u8[8192]{0}', space=vmem, size = 0x2000, scoped, tag = 'output window, operand 0, single buffered']
    %8 = vsyncpa [#allocation3], 0
    %9 = vsyncpa [#allocation4], 0
    // Predicated region
    $region2: #{tpu_custom_call.1} parent=1 // pred_check
      _
    $region3: #{tpu_custom_call.1} parent=1 // pred_check_branch
      %11 = sbr.rel (0) target = $region5
    $region4: #{tpu_custom_call.1} parent=1 // pred_region
      _
    $region5: #{tpu_custom_call.1} parent=1 // pred_fallthru
      _
    // Predicated region
    $region6: #{tpu_custom_call.1} parent=1 // pred_check
      _
    $region7: #{tpu_custom_call.1} parent=1 // pred_check_branch
      %13 = sbr.rel (0) target = $region9
    $region8: #{tpu_custom_call.1} parent=1 // pred_region
      _
    $region9: #{tpu_custom_call.1} parent=1 // pred_fallthru
      _
    // Predicated region
    $region10: #{tpu_custom_call.1} parent=1 // pred_check
      _
    $region11: #{tpu_custom_call.1} parent=1 // pred_check_branch
      %15 = sbr.rel (0) target = $region13
    $region12: #{tpu_custom_call.1} parent=1 // pred_region
      %17 = vsyncadd [#allocation3], 0
      %s18 = sshll.u32 %s2, 4
      %s19 = int_to_ptr.hbm [resolvable:$true] %s18
      %s20 = sshll.u32 [#allocation2], 4
      %s21 = int_to_ptr.vmem [resolvable:$true] %s20
      %26 = dma.hbm_to_vmem [thread:$0]  %s19, 256, %s21, [#allocation3], 128, 128, 8
    $region13: #{tpu_custom_call.1} parent=1 // pred_fallthru
      _
    // Predicated region
    $region14: #{tpu_custom_call.1} parent=1 // pred_check
      _
    $region15: #{tpu_custom_call.1} parent=1 // pred_check_branch
      %28 = sbr.rel (0) target = $region17
    $region16: #{tpu_custom_call.1} parent=1 // pred_region
      %30 = dma.done [#allocation3], 256
    $region17: #{tpu_custom_call.1} parent=1 // pred_fallthru
      _
    %v31 = vld [vmem:[%s0] sm:$0xff]
    %v32 = vld [vmem:[%s0 + $0x8] sm:$0xff]
    %vm33 = vcmask 261120
    %34 = vst.msk [vmem:[#allocation5] sm:$0xff] %vm33, %v31
    %35 = vst.msk [vmem:[#allocation5 + $0x8] sm:$0xff] %vm33, %v32
    %v36 = vld [vmem:[%s1] sm:$0xff]
    %v37 = vld [vmem:[%s1 + $0x8] sm:$0xff]
    %40 = vrot.lane.b32.xlu0 %v36, 32
    %v41 = vpop.permute.xlu0 %40
    %42 = vrot.lane.b32.xlu0 %v37, 32
    %v43 = vpop.permute.xlu0 %42
    %vm46 = vcmask 326912
    %47 = vst.msk [vmem:[#allocation5] sm:$0xff] %vm46, %v41
    %48 = vst.msk [vmem:[#allocation5 + $0x8] sm:$0xff] %vm46, %v43
    %v49 = vld [vmem:[#allocation2] sm:$0xff]
    %v50 = vld [vmem:[#allocation2 + $0x8] sm:$0xff]
    %53 = vrot.lane.b32.xlu0 %v49, 40
    %v54 = vpop.permute.xlu0 %53
    %55 = vrot.lane.b32.xlu0 %v50, 40
    %v56 = vpop.permute.xlu0 %55
    %vm59 = vcmask 458048
    %60 = vst.msk [vmem:[#allocation5] sm:$0xff] %vm59, %v54
    %61 = vst.msk [vmem:[#allocation5 + $0x8] sm:$0xff] %vm59, %v56
    // Predicated region
    $region18: #{tpu_custom_call.1} parent=1 // pred_check
      _
    $region19: #{tpu_custom_call.1} parent=1 // pred_check_branch
      %63 = sbr.rel (0) target = $region21
    $region20: #{tpu_custom_call.1} parent=1 // pred_region
      %65 = vsyncadd [#allocation4], 0
      %s66 = sshll.u32 [#allocation5], 4
      %s67 = int_to_ptr.vmem [resolvable:$true] %s66
      %s68 = sshll.u32 %s3, 4
      %s69 = int_to_ptr.hbm [resolvable:$true] %s68
      %74 = dma.vmem_to_hbm [thread:$0]  %s67, 256, %s69, [#allocation4], 128, 128, 8
    $region21: #{tpu_custom_call.1} parent=1 // pred_fallthru
      _
    // Predicated region
    $region22: #{tpu_custom_call.1} parent=1 // pred_check
      _
    $region23: #{tpu_custom_call.1} parent=1 // pred_check_branch
      %76 = sbr.rel (0) target = $region25
    $region24: #{tpu_custom_call.1} parent=1 // pred_region
      %78 = dma.done [#allocation4], 256
    $region25: #{tpu_custom_call.1} parent=1 // pred_fallthru
      _
    %79 = vsyncpa [#allocation3], 1
    %80 = vsyncpa [#allocation4], 1

</llo_original>
